<compile_context>
chip_gen: v7x
topology: tpu7x:2x2x1
jax: 0.10.0
libtpu: 0.0.40
codegen_flags: <defaults>
</compile_context>

<pallas_src>
import functools

import jax
import jax.numpy as jnp
from jax.experimental import pallas as pl
from jax.experimental.pallas import tpu as pltpu

# ---- quantization config (config['quantization_parameters']) ----------------
F_BITS = 4.0          # default_fractional_bits
I_BITS = 3.0          # default_integer_bits
SYMMETRIC = False     # use_symmetric_quantization -> overflow 'SAT' (not 'SAT_SYM')


def _fixed_quant(x, i_bits, f_bits, symmetric):
    """Fixed-point quantizer: k=1 sign bit, i integer bits, f fractional bits,
    RND rounding, SAT / SAT_SYM overflow. Division replaced by exact
    power-of-two reciprocal multiply."""
    scale = 2.0 ** f_bits
    inv_scale = 2.0 ** (-f_bits)
    hi = 2.0 ** i_bits - inv_scale
    lo = -(2.0 ** i_bits) + (inv_scale if symmetric else 0.0)
    # TODO(synk): 'RND' implemented as round-half-up; some pquant versions use
    # 'TRN' (truncate) or round-half-away-from-zero for the non-HGQ quantizer.
    q = jnp.floor(x * scale + 0.5) * inv_scale
    return jnp.clip(q, lo, hi)


# -----------------------------------------------------------------------------
# Fused kernel: prune + quantize + matmul + bias in one pass (m_tiles == 1).
# -----------------------------------------------------------------------------
def _fused_kernel(x_ref, w_ref, m_ref, b_ref, o_ref, acc_ref, *, compute_in_bf16):
    """x_ref: (tm, tk) activations.  w_ref: (tk, tn) f32 weight (transposed).
       m_ref: (tk, tn) bf16 0/1 pruning mask.  b_ref: (1, tn) quantized bias.
       o_ref: (tm, tn).  acc_ref: (tm, tn) f32 scratch accumulator."""
    k = pl.program_id(2)

    @pl.when(k == 0)
    def _():
        acc_ref[...] = jnp.zeros_like(acc_ref)

    # Prune + quantize this weight tile on the VPU; with m_tiles == 1 every
    # weight element is touched exactly once, and the elementwise work hides
    # under the MXU matmul of the same tile.
    w = w_ref[...] * m_ref[...].astype(jnp.float32)
    w = _fixed_quant(w, I_BITS, F_BITS, SYMMETRIC)

    x = x_ref[...]
    if compute_in_bf16:
        x = x.astype(jnp.bfloat16)
        w = w.astype(jnp.bfloat16)   # lossless for i=3, f=4 values
    acc_ref[...] += jnp.dot(x, w, preferred_element_type=jnp.float32)

    @pl.when(k == pl.num_programs(2) - 1)
    def _():
        o_ref[...] = (acc_ref[...] + b_ref[...]).astype(o_ref.dtype)


# -----------------------------------------------------------------------------
# Two-stage path, stage 1: prune + quantize the (transposed, padded) weight once.
# -----------------------------------------------------------------------------
def _prune_quant_kernel(w_ref, m_ref, wq_ref):
    """w_ref: (tk, tn) f32 weight tile (already transposed to (in, out)).
       m_ref: (tk, tn) bf16 0/1 pruning-mask tile.
       wq_ref: (tk, tn) bf16 quantized-weight tile (lossless for i=3,f=4)."""
    w = w_ref[...] * m_ref[...].astype(jnp.float32)
    wq_ref[...] = _fixed_quant(w, I_BITS, F_BITS, SYMMETRIC).astype(wq_ref.dtype)


# -----------------------------------------------------------------------------
# Two-stage path, stage 2: tiled matmul + bias on the MXU.
# -----------------------------------------------------------------------------
def _matmul_bias_kernel(x_ref, wq_ref, bq_ref, o_ref, acc_ref, *, compute_in_bf16):
    """x_ref: (tm, tk) activations.  wq_ref: (tk, tn) bf16 quantized weight.
       bq_ref: (1, tn) quantized bias.  o_ref: (tm, tn).  acc_ref: f32 scratch."""
    k = pl.program_id(2)

    @pl.when(k == 0)
    def _():
        acc_ref[...] = jnp.zeros_like(acc_ref)

    x = x_ref[...]
    w = wq_ref[...]
    if compute_in_bf16:
        x = x.astype(jnp.bfloat16)               # full-rate bf16 MXU path
    else:
        w = w.astype(jnp.float32)                # exact f32 accumulation
    acc_ref[...] += jnp.dot(x, w, preferred_element_type=jnp.float32)

    @pl.when(k == pl.num_programs(2) - 1)
    def _():
        o_ref[...] = (acc_ref[...] + bq_ref[...]).astype(o_ref.dtype)


def _round_up(x, m):
    return (x + m - 1) // m * m


@functools.partial(
    jax.jit, static_argnames=("tm_max", "tn_max", "tk_max", "compute_in_bf16"))
def compressed_linear(x, weight, mask, bias, *,
                      tm_max=256, tn_max=256, tk_max=512,
                      compute_in_bf16=False):
    """x: (batch, seq, in).  weight/mask: (out, in).  bias: (out,)."""
    batch, seq, in_f = x.shape
    out_f = weight.shape[0]
    rows = batch * seq

    # Adaptive, hardware-aligned tile sizes (sublane mult-of-8, lane mult-of-128).
    tm = min(tm_max, _round_up(rows, 8))
    tn = min(tn_max, _round_up(out_f, 128))
    tk = min(tk_max, _round_up(in_f, 128))
    m_pad = _round_up(rows, tm)
    n_pad = _round_up(out_f, tn)
    k_pad = _round_up(in_f, tk)
    m_tiles, n_tiles, k_tiles = m_pad // tm, n_pad // tn, k_pad // tk

    # Pad everything so every block is full-size and lane-dense; padded zeros
    # quantize to zero and contribute nothing to the matmul.
    x2 = jnp.pad(x.reshape(rows, in_f).astype(jnp.float32),
                 ((0, m_pad - rows), (0, k_pad - in_f)))
    wt = jnp.pad(weight.T.astype(jnp.float32),
                 ((0, k_pad - in_f), (0, n_pad - out_f)))
    mt = jnp.pad(mask.T.astype(jnp.bfloat16),            # 0/1 mask: bf16 exact
                 ((0, k_pad - in_f), (0, n_pad - out_f)))

    # Bias is tiny: quantize once here (not per grid step), pad lane-dense.
    bq = _fixed_quant(bias.astype(jnp.float32), I_BITS, F_BITS, SYMMETRIC)
    bq = jnp.pad(bq, (0, n_pad - out_f)).reshape(1, n_pad)

    cparams = pltpu.CompilerParams(
        dimension_semantics=("parallel", "parallel", "arbitrary"),
        vmem_limit_bytes=32 * 1024 * 1024)

    if m_tiles == 1:
        # ---- Fused single-pass kernel: no weight HBM round-trip --------------
        kernel = functools.partial(_fused_kernel, compute_in_bf16=compute_in_bf16)
        out = pl.pallas_call(
            kernel,
            out_shape=jax.ShapeDtypeStruct((m_pad, n_pad), x.dtype),
            grid_spec=pltpu.PrefetchScalarGridSpec(
                num_scalar_prefetch=0,
                grid=(m_tiles, n_tiles, k_tiles),
                in_specs=[
                    pl.BlockSpec((tm, tk), lambda i, j, k: (i, k)),
                    pl.BlockSpec((tk, tn), lambda i, j, k: (k, j)),
                    pl.BlockSpec((tk, tn), lambda i, j, k: (k, j)),
                    pl.BlockSpec((1, tn), lambda i, j, k: (0, j)),
                ],
                out_specs=pl.BlockSpec((tm, tn), lambda i, j, k: (i, j)),
                scratch_shapes=[pltpu.VMEM((tm, tn), jnp.float32)],
            ),
            compiler_params=cparams,
        )(x2, wt, mt, bq)
        return out[:rows, :out_f].reshape(batch, seq, out_f)

    # ---- Two-stage path (weight re-used across many M tiles) ----------------
    # Stage 1: prune + quantize weight once (mem-bound), output bf16.
    wq = pl.pallas_call(
        _prune_quant_kernel,
        out_shape=jax.ShapeDtypeStruct((k_pad, n_pad), jnp.bfloat16),
        grid_spec=pltpu.PrefetchScalarGridSpec(
            num_scalar_prefetch=0,
            grid=(k_tiles, n_tiles),
            in_specs=[
                pl.BlockSpec((tk, tn), lambda i, j: (i, j)),
                pl.BlockSpec((tk, tn), lambda i, j: (i, j)),
            ],
            out_specs=pl.BlockSpec((tk, tn), lambda i, j: (i, j)),
        ),
        compiler_params=pltpu.CompilerParams(
            dimension_semantics=("parallel", "parallel"),
            vmem_limit_bytes=32 * 1024 * 1024),
    )(wt, mt)

    # Stage 2: tiled matmul + bias.
    kernel = functools.partial(_matmul_bias_kernel,
                               compute_in_bf16=compute_in_bf16)
    out = pl.pallas_call(
        kernel,
        out_shape=jax.ShapeDtypeStruct((m_pad, n_pad), x.dtype),
        grid_spec=pltpu.PrefetchScalarGridSpec(
            num_scalar_prefetch=0,
            grid=(m_tiles, n_tiles, k_tiles),
            in_specs=[
                pl.BlockSpec((tm, tk), lambda i, j, k: (i, k)),
                pl.BlockSpec((tk, tn), lambda i, j, k: (k, j)),
                pl.BlockSpec((1, tn), lambda i, j, k: (0, j)),
            ],
            out_specs=pl.BlockSpec((tm, tn), lambda i, j, k: (i, j)),
            scratch_shapes=[pltpu.VMEM((tm, tn), jnp.float32)],
        ),
        compiler_params=cparams,
    )(x2, wq, bq)

    return out[:rows, :out_f].reshape(batch, seq, out_f)


def _reference(x, weight, mask, bias):
    w = weight * mask
    wq = _fixed_quant(w, I_BITS, F_BITS, SYMMETRIC)
    bq = _fixed_quant(bias, I_BITS, F_BITS, SYMMETRIC)
    return (jnp.einsum("bsi,oi->bso", x, wq, precision=jax.lax.Precision.HIGHEST)
            + bq)


def _make_inputs(key, batch, seq, in_features, out_features):
    k_x, k_w, k_b, k_m = jax.random.split(key, 4)
    x = jax.random.normal(k_x, (batch, seq, in_features), dtype=jnp.float32)
    # deterministic "layer" parameters (nn.Linear-like init)
    weight = jax.random.uniform(
        k_w, (out_features, in_features), jnp.float32,
        minval=-1.0 / jnp.sqrt(in_features), maxval=1.0 / jnp.sqrt(in_features))
    bias = jax.random.uniform(
        k_b, (out_features,), jnp.float32,
        minval=-1.0 / jnp.sqrt(in_features), maxval=1.0 / jnp.sqrt(in_features))
    # deterministic pruning mask (~50% kept) standing in for pruning_layer(weight)
    mask = (jax.random.uniform(k_m, (out_features, in_features)) > 0.5
            ).astype(jnp.float32)
    return x, weight, mask, bias


if __name__ == "__main__":
    key = jax.random.PRNGKey(0)
    k1, k2 = jax.random.split(key)

    # Case 1 (fused single-pass path): small batch, module-like shapes.
    batch, seq, in_features, out_features = 2, 8, 32, 16
    x, weight, mask, bias = _make_inputs(k1, batch, seq, in_features, out_features)
    y = jax.block_until_ready(compressed_linear(x, weight, mask, bias))
    y_ref = _reference(x, weight, mask, bias)
    assert y.shape == (batch, seq, out_features)
    assert jnp.allclose(y, y_ref, atol=1e-5, rtol=1e-5)

    # Case 2 (two-stage path): more rows than one M tile, non-aligned dims.
    batch2, seq2, in2, out2 = 4, 80, 160, 200
    x2, w2, m2, b2 = _make_inputs(k2, batch2, seq2, in2, out2)
    y2 = jax.block_until_ready(compressed_linear(x2, w2, m2, b2))
    y2_ref = _reference(x2, w2, m2, b2)
    assert y2.shape == (batch2, seq2, out2)
    assert jnp.allclose(y2, y2_ref, atol=1e-3, rtol=1e-3)

    print("KERNEL_OK")
</pallas_src>

<mosaic_0001>
module attributes {stable_mosaic.version = 11 : i64} {
  func.func @_fused_kernel(%arg0: i32, %arg1: i32, %arg2: i32, %arg3: memref<16x128xf32, #tpu.memory_space<vmem>>, %arg4: memref<128x128xf32, #tpu.memory_space<vmem>>, %arg5: memref<128x128xbf16, #tpu.memory_space<vmem>>, %arg6: memref<1x128xf32, #tpu.memory_space<vmem>>, %arg7: memref<16x128xf32, #tpu.memory_space<vmem>>, %arg8: memref<16x128xf32, #tpu.memory_space<vmem>>) attributes {dimension_semantics = [#tpu.dimension_semantics<parallel>, #tpu.dimension_semantics<parallel>, #tpu.dimension_semantics<arbitrary>], iteration_bounds = array<i64: 1, 1, 1>, scalar_prefetch = 0 : i64, scratch_operands = 1 : i64, tpu.core_type = #tpu.core_type<tc>, window_params = [{transform_indices = @transform_0, window_bounds = array<i64: 16, 128>}, {transform_indices = @transform_1, window_bounds = array<i64: 128, 128>}, {transform_indices = @transform_2, window_bounds = array<i64: 128, 128>}, {transform_indices = @transform_3, window_bounds = array<i64: 1, 128>}, {transform_indices = @transform_4, window_bounds = array<i64: 16, 128>}]} {
    %c0_i32 = arith.constant 0 : i32
    %0 = arith.cmpi eq, %arg2, %c0_i32 : i32
    %1 = arith.extui %0 : i1 to i32
    %c0_i32_0 = arith.constant 0 : i32
    %2 = arith.cmpi ne, %1, %c0_i32_0 : i32
    scf.if %2 {
      %cst_17 = arith.constant 0.000000e+00 : f32
      %26 = vector.broadcast %cst_17 : f32 to vector<16x128xf32>
      %c0_18 = arith.constant 0 : index
      %c0_19 = arith.constant 0 : index
      %27 = vector.load %arg8[%c0_18, %c0_19] : memref<16x128xf32, #tpu.memory_space<vmem>>, vector<16x128xf32>
      tpu.vector_store %arg8[%c0_18, %c0_19], %26 {strides = array<i32>} : memref<16x128xf32, #tpu.memory_space<vmem>>, vector<16x128xf32>,
    } else {
    }
    %c0 = arith.constant 0 : index
    %c0_1 = arith.constant 0 : index
    %3 = vector.load %arg4[%c0, %c0_1] : memref<128x128xf32, #tpu.memory_space<vmem>>, vector<128x128xf32>
    %c0_2 = arith.constant 0 : index
    %c0_3 = arith.constant 0 : index
    %4 = vector.load %arg5[%c0_2, %c0_3] : memref<128x128xbf16, #tpu.memory_space<vmem>>, vector<128x128xbf16>
    %5 = arith.extf %4 : vector<128x128xbf16> to vector<128x128xf32>
    %6 = arith.mulf %3, %5 : vector<128x128xf32>
    %cst = arith.constant 1.600000e+01 : f32
    %7 = vector.broadcast %cst : f32 to vector<128x128xf32>
    %8 = arith.mulf %6, %7 : vector<128x128xf32>
    %cst_4 = arith.constant 5.000000e-01 : f32
    %9 = vector.broadcast %cst_4 : f32 to vector<128x128xf32>
    %10 = arith.addf %8, %9 : vector<128x128xf32>
    %11 = math.floor %10 : vector<128x128xf32>
    %cst_5 = arith.constant 6.250000e-02 : f32
    %12 = vector.broadcast %cst_5 : f32 to vector<128x128xf32>
    %13 = arith.mulf %11, %12 : vector<128x128xf32>
    %cst_6 = arith.constant -8.000000e+00 : f32
    %cst_7 = arith.constant 7.937500e+00 : f32
    %14 = vector.broadcast %cst_6 : f32 to vector<128x128xf32>
    %15 = arith.maximumf %14, %13 : vector<128x128xf32>
    %16 = vector.broadcast %cst_7 : f32 to vector<128x128xf32>
    %17 = arith.minimumf %16, %15 : vector<128x128xf32>
    %c0_8 = arith.constant 0 : index
    %c0_9 = arith.constant 0 : index
    %18 = vector.load %arg3[%c0_8, %c0_9] : memref<16x128xf32, #tpu.memory_space<vmem>>, vector<16x128xf32>
    %c0_10 = arith.constant 0 : index
    %c0_11 = arith.constant 0 : index
    %19 = vector.load %arg8[%c0_10, %c0_11] : memref<16x128xf32, #tpu.memory_space<vmem>>, vector<16x128xf32>
    %cst_12 = arith.constant dense<0.000000e+00> : vector<16x128xf32>
    %20 = tpu.matmul %18, %17, %cst_12 {dimension_numbers = #tpu.dot_dimension_numbers<[1], [0], [0], [1], [0, 0, 1, 1], [], []>} : vector<16x128xf32>, vector<128x128xf32>, vector<16x128xf32> -> vector<16x128xf32>
    %21 = arith.addf %19, %20 : vector<16x128xf32>
    %c0_13 = arith.constant 0 : index
    %c0_14 = arith.constant 0 : index
    %22 = vector.load %arg8[%c0_13, %c0_14] : memref<16x128xf32, #tpu.memory_space<vmem>>, vector<16x128xf32>
    tpu.vector_store %arg8[%c0_13, %c0_14], %21 {strides = array<i32>} : memref<16x128xf32, #tpu.memory_space<vmem>>, vector<16x128xf32>,
    %c0_i32_15 = arith.constant 0 : i32
    %23 = arith.cmpi eq, %arg2, %c0_i32_15 : i32
    %24 = arith.extui %23 : i1 to i32
    %c0_i32_16 = arith.constant 0 : i32
    %25 = arith.cmpi ne, %24, %c0_i32_16 : i32
    scf.if %25 {
      %c0_17 = arith.constant 0 : index
      %c0_18 = arith.constant 0 : index
      %26 = vector.load %arg8[%c0_17, %c0_18] : memref<16x128xf32, #tpu.memory_space<vmem>>, vector<16x128xf32>
      %c0_19 = arith.constant 0 : index
      %c0_20 = arith.constant 0 : index
      %27 = vector.load %arg6[%c0_19, %c0_20] : memref<1x128xf32, #tpu.memory_space<vmem>>, vector<1x128xf32>
      %28 = vector.broadcast %27 : vector<1x128xf32> to vector<16x128xf32>
      %29 = arith.addf %26, %28 : vector<16x128xf32>
      %c0_21 = arith.constant 0 : index
      %c0_22 = arith.constant 0 : index
      %30 = vector.load %arg7[%c0_21, %c0_22] : memref<16x128xf32, #tpu.memory_space<vmem>>, vector<16x128xf32>
      tpu.vector_store %arg7[%c0_21, %c0_22], %29 {strides = array<i32>} : memref<16x128xf32, #tpu.memory_space<vmem>>, vector<16x128xf32>,
    } else {
    }
    return
  }
  func.func @transform_0(%arg0: i32, %arg1: i32, %arg2: i32) -> (i32, i32) {
    %c0_i32 = arith.constant 0 : i32
    return %arg0, %arg2 : i32, i32
  }
  func.func @transform_1(%arg0: i32, %arg1: i32, %arg2: i32) -> (i32, i32) {
    %c0_i32 = arith.constant 0 : i32
    return %arg2, %arg1 : i32, i32
  }
  func.func @transform_2(%arg0: i32, %arg1: i32, %arg2: i32) -> (i32, i32) {
    %c0_i32 = arith.constant 0 : i32
    return %arg2, %arg1 : i32, i32
  }
  func.func @transform_3(%arg0: i32, %arg1: i32, %arg2: i32) -> (i32, i32) {
    %c0_i32 = arith.constant 0 : i32
    %c0_i32_0 = arith.constant 0 : i32
    return %c0_i32, %arg1 : i32, i32
  }
  func.func @transform_4(%arg0: i32, %arg1: i32, %arg2: i32) -> (i32, i32) {
    %c0_i32 = arith.constant 0 : i32
    return %arg0, %arg1 : i32, i32
  }
}

</mosaic_0001>

<llo_original>
// kernel: compressed_linear.1
$region0: #{compressed_linear.1}
  #allocation0 [shape = 'u32[]', space=smem, size = 0x4, offset = 0x4, fixed_abs, tag = 'smem constant byte address 0x4 - core index']
  #allocation1 [shape = 'u32[144,128]{1,0:T(1,128)}', space=vmem, size = 0x12000, scoped, tag = 'internal scratch']
  #allocation2 [shape = 'f32[16,128]{1,0:T(8,128)}', space=vmem, size = 0x2000, scoped, tag = 'scratch operand']
  %s0 = inlined_call_operand.vmem [shape: f32[16,128], index: 0, kind: input, shape index: {}]
  %s1 = inlined_call_operand.vmem [shape: f32[128,128], index: 1, kind: input, shape index: {}]
  %s2 = inlined_call_operand.vmem [shape: bf16[128,128], index: 2, kind: input, shape index: {}]
  %s3 = inlined_call_operand.vmem [shape: f32[1,128], index: 3, kind: input, shape index: {}]
  %s4 = inlined_call_operand.vmem [shape: f32[16,128], index: 4, kind: output, shape index: {}]
  %s5 = sld [smem:[#allocation0]]
  $region34: #{compressed_linear.1} parent=0
    _
  %s7 = ssub.s32 1, %s5
  %s8 = scalar_select 0, %s7, %s5
  // Predicated region
  $region2: #{compressed_linear.1} parent=0 // pred_check
    _
  $region3: #{compressed_linear.1} parent=0 // pred_check_branch
    %10 = sbr.rel (0) target = $region5
  $region4: #{compressed_linear.1} parent=0 // pred_region
    _
  $region5: #{compressed_linear.1} parent=0 // pred_fallthru
    _
  // Predicated region
  $region6: #{compressed_linear.1} parent=0 // pred_check
    _
  $region7: #{compressed_linear.1} parent=0 // pred_check_branch
    %12 = sbr.rel (0) target = $region9
  $region8: #{compressed_linear.1} parent=0 // pred_region
    _
  $region9: #{compressed_linear.1} parent=0 // pred_fallthru
    _
  // Predicated region
  $region10: #{compressed_linear.1} parent=0 // pred_check
    _
  $region11: #{compressed_linear.1} parent=0 // pred_check_branch
    %14 = sbr.rel (0) target = $region13
  $region12: #{compressed_linear.1} parent=0 // pred_region
    _
  $region13: #{compressed_linear.1} parent=0 // pred_fallthru
    _
  // Predicated region
  $region14: #{compressed_linear.1} parent=0 // pred_check
    _
  $region15: #{compressed_linear.1} parent=0 // pred_check_branch
    %16 = sbr.rel (0) target = $region17
  $region16: #{compressed_linear.1} parent=0 // pred_region
    _
  $region17: #{compressed_linear.1} parent=0 // pred_fallthru
    _
  %p17 = scmp.eq.s32.totalorder 0, 0
  // Predicated region
  $region18: #{compressed_linear.1} parent=0 // pred_check
    %p18 = pneg %p17
  $region19: #{compressed_linear.1} parent=0 // pred_check_branch
    %20 = sbr.rel (%p18) target = $region21
  $region20: #{compressed_linear.1} parent=0 // pred_region
    %21 = vst [vmem:[#allocation2] sm:$0xff] 0.0
    %22 = vst [vmem:[#allocation2 + $0x8] sm:$0xff] 0.0
  $region21: #{compressed_linear.1} parent=0 // pred_fallthru
    _
  %v23 = vld [vmem:[%s1] sm:$0xff]
  %v24 = vld [vmem:[%s1 + $0x8] sm:$0xff]
  %v25 = vld [vmem:[%s1 + $0x10] sm:$0xff]
  %v26 = vld [vmem:[%s1 + $0x18] sm:$0xff]
  %v27 = vld [vmem:[%s1 + $0x20] sm:$0xff]
  %v28 = vld [vmem:[%s1 + $0x28] sm:$0xff]
  %v29 = vld [vmem:[%s1 + $0x30] sm:$0xff]
  %v30 = vld [vmem:[%s1 + $0x38] sm:$0xff]
  %v31 = vld [vmem:[%s1 + $0x40] sm:$0xff]
  %v32 = vld [vmem:[%s1 + $0x48] sm:$0xff]
  %v33 = vld [vmem:[%s1 + $0x50] sm:$0xff]
  %v34 = vld [vmem:[%s1 + $0x58] sm:$0xff]
  %v35 = vld [vmem:[%s1 + $0x60] sm:$0xff]
  %v36 = vld [vmem:[%s1 + $0x68] sm:$0xff]
  %v37 = vld [vmem:[%s1 + $0x70] sm:$0xff]
  %v38 = vld [vmem:[%s1 + $0x78] sm:$0xff]
  %v39 = vld [vmem:[%s2] sm:$0xf]
  %v40 = vld [vmem:[%s2 + $0x4] sm:$0xf]
  %v41 = vld [vmem:[%s2 + $0x8] sm:$0xf]
  %v42 = vld [vmem:[%s2 + $0xc] sm:$0xf]
  %v43 = vld [vmem:[%s2 + $0x10] sm:$0xf]
  %v44 = vld [vmem:[%s2 + $0x14] sm:$0xf]
  %v45 = vld [vmem:[%s2 + $0x18] sm:$0xf]
  %v46 = vld [vmem:[%s2 + $0x1c] sm:$0xf]
  %v47 = vld [vmem:[%s2 + $0x20] sm:$0xf]
  %v48 = vld [vmem:[%s2 + $0x24] sm:$0xf]
  %v49 = vld [vmem:[%s2 + $0x28] sm:$0xf]
  %v50 = vld [vmem:[%s2 + $0x2c] sm:$0xf]
  %v51 = vld [vmem:[%s2 + $0x30] sm:$0xf]
  %v52 = vld [vmem:[%s2 + $0x34] sm:$0xf]
  %v53 = vld [vmem:[%s2 + $0x38] sm:$0xf]
  %v54 = vld [vmem:[%s2 + $0x3c] sm:$0xf]
  %v55 = vunpack.c.l.bf16 %v39
  %v56 = vunpack.c.l.bf16 %v40
  %v57 = vunpack.c.l.bf16 %v41
  %v58 = vunpack.c.l.bf16 %v42
  %v59 = vunpack.c.l.bf16 %v43
  %v60 = vunpack.c.l.bf16 %v44
  %v61 = vunpack.c.l.bf16 %v45
  %v62 = vunpack.c.l.bf16 %v46
  %v63 = vunpack.c.l.bf16 %v47
  %v64 = vunpack.c.l.bf16 %v48
  %v65 = vunpack.c.l.bf16 %v49
  %v66 = vunpack.c.l.bf16 %v50
  %v67 = vunpack.c.l.bf16 %v51
  %v68 = vunpack.c.l.bf16 %v52
  %v69 = vunpack.c.l.bf16 %v53
  %v70 = vunpack.c.l.bf16 %v54
  %v71 = vmul.f32 %v23, %v55
  %v72 = vmul.f32 %v24, %v56
  %v73 = vmul.f32 %v25, %v57
  %v74 = vmul.f32 %v26, %v58
  %v75 = vmul.f32 %v27, %v59
  %v76 = vmul.f32 %v28, %v60
  %v77 = vmul.f32 %v29, %v61
  %v78 = vmul.f32 %v30, %v62
  %v79 = vmul.f32 %v31, %v63
  %v80 = vmul.f32 %v32, %v64
  %v81 = vmul.f32 %v33, %v65
  %v82 = vmul.f32 %v34, %v66
  %v83 = vmul.f32 %v35, %v67
  %v84 = vmul.f32 %v36, %v68
  %v85 = vmul.f32 %v37, %v69
  %v86 = vmul.f32 %v38, %v70
  %v87 = vmul.f32 %v71, 16.0
  %v88 = vmul.f32 %v72, 16.0
  %v89 = vmul.f32 %v73, 16.0
  %v90 = vmul.f32 %v74, 16.0
  %v91 = vmul.f32 %v75, 16.0
  %v92 = vmul.f32 %v76, 16.0
  %v93 = vmul.f32 %v77, 16.0
  %v94 = vmul.f32 %v78, 16.0
  %v95 = vmul.f32 %v79, 16.0
  %v96 = vmul.f32 %v80, 16.0
  %v97 = vmul.f32 %v81, 16.0
  %v98 = vmul.f32 %v82, 16.0
  %v99 = vmul.f32 %v83, 16.0
  %v100 = vmul.f32 %v84, 16.0
  %v101 = vmul.f32 %v85, 16.0
  %v102 = vmul.f32 %v86, 16.0
  %v103 = vadd.f32 %v87, 0.5
  %v104 = vadd.f32 %v88, 0.5
  %v105 = vadd.f32 %v89, 0.5
  %v106 = vadd.f32 %v90, 0.5
  %v107 = vadd.f32 %v91, 0.5
  %v108 = vadd.f32 %v92, 0.5
  %v109 = vadd.f32 %v93, 0.5
  %v110 = vadd.f32 %v94, 0.5
  %v111 = vadd.f32 %v95, 0.5
  %v112 = vadd.f32 %v96, 0.5
  %v113 = vadd.f32 %v97, 0.5
  %v114 = vadd.f32 %v98, 0.5
  %v115 = vadd.f32 %v99, 0.5
  %v116 = vadd.f32 %v100, 0.5
  %v117 = vadd.f32 %v101, 0.5
  %v118 = vadd.f32 %v102, 0.5
  %v119 = vfloor.f32 %v103
  %v120 = vfloor.f32 %v104
  %v121 = vfloor.f32 %v105
  %v122 = vfloor.f32 %v106
  %v123 = vfloor.f32 %v107
  %v124 = vfloor.f32 %v108
  %v125 = vfloor.f32 %v109
  %v126 = vfloor.f32 %v110
  %v127 = vfloor.f32 %v111
  %v128 = vfloor.f32 %v112
  %v129 = vfloor.f32 %v113
  %v130 = vfloor.f32 %v114
  %v131 = vfloor.f32 %v115
  %v132 = vfloor.f32 %v116
  %v133 = vfloor.f32 %v117
  %v134 = vfloor.f32 %v118
  %v135 = vmul.f32 %v119, 0.0625
  %v136 = vmul.f32 %v120, 0.0625
  %v137 = vmul.f32 %v121, 0.0625
  %v138 = vmul.f32 %v122, 0.0625
  %v139 = vmul.f32 %v123, 0.0625
  %v140 = vmul.f32 %v124, 0.0625
  %v141 = vmul.f32 %v125, 0.0625
  %v142 = vmul.f32 %v126, 0.0625
  %v143 = vmul.f32 %v127, 0.0625
  %v144 = vmul.f32 %v128, 0.0625
  %v145 = vmul.f32 %v129, 0.0625
  %v146 = vmul.f32 %v130, 0.0625
  %v147 = vmul.f32 %v131, 0.0625
  %v148 = vmul.f32 %v132, 0.0625
  %v149 = vmul.f32 %v133, 0.0625
  %v150 = vmul.f32 %v134, 0.0625
  %v151 = vmax.f32 %v135, -8.0
  %v152 = vmax.f32 %v136, -8.0
  %v153 = vmax.f32 %v137, -8.0
  %v154 = vmax.f32 %v138, -8.0
  %v155 = vmax.f32 %v139, -8.0
  %v156 = vmax.f32 %v140, -8.0
  %v157 = vmax.f32 %v141, -8.0
  %v158 = vmax.f32 %v142, -8.0
  %v159 = vmax.f32 %v143, -8.0
  %v160 = vmax.f32 %v144, -8.0
  %v161 = vmax.f32 %v145, -8.0
  %v162 = vmax.f32 %v146, -8.0
  %v163 = vmax.f32 %v147, -8.0
  %v164 = vmax.f32 %v148, -8.0
  %v165 = vmax.f32 %v149, -8.0
  %v166 = vmax.f32 %v150, -8.0
  %v167 = vmin.f32 %v151, 7.9375
  %v168 = vmin.f32 %v152, 7.9375
  %v169 = vmin.f32 %v153, 7.9375
  %v170 = vmin.f32 %v154, 7.9375
  %v171 = vmin.f32 %v155, 7.9375
  %v172 = vmin.f32 %v156, 7.9375
  %v173 = vmin.f32 %v157, 7.9375
  %v174 = vmin.f32 %v158, 7.9375
  %v175 = vmin.f32 %v159, 7.9375
  %v176 = vmin.f32 %v160, 7.9375
  %v177 = vmin.f32 %v161, 7.9375
  %v178 = vmin.f32 %v162, 7.9375
  %v179 = vmin.f32 %v163, 7.9375
  %v180 = vmin.f32 %v164, 7.9375
  %v181 = vmin.f32 %v165, 7.9375
  %v182 = vmin.f32 %v166, 7.9375
  %v183 = vld [vmem:[%s0] sm:$0xff]
  %v184 = vld [vmem:[%s0 + $0x8] sm:$0xff]
  %v185 = vld [vmem:[#allocation2] sm:$0xff]
  %v186 = vld [vmem:[#allocation2 + $0x8] sm:$0xff]
  %187 = vmatprep.subr.mxu0 0.0
  %188 = vmatpush1.msra.mxu0 %v167
  %189 = vmatprep.subr.mxu0 0.0
  %190 = vmatpush1.msra.mxu0 %v168
  %191 = vmatprep.subr.mxu0 0.0
  %192 = vmatpush1.msra.mxu0 %v169
  %193 = vmatprep.subr.mxu0 0.0
  %194 = vmatpush1.msra.mxu0 %v170
  %195 = vmatprep.subr.mxu0 0.0
  %196 = vmatpush1.msra.mxu0 %v171
  %197 = vmatprep.subr.mxu0 0.0
  %198 = vmatpush1.msra.mxu0 %v172
  %199 = vmatprep.subr.mxu0 0.0
  %200 = vmatpush1.msra.mxu0 %v173
  %201 = vmatprep.subr.mxu0 0.0
  %202 = vmatpush1.msra.mxu0 %v174
  %203 = vmatprep.subr.mxu0 0.0
  %204 = vmatpush1.msra.mxu0 %v175
  %205 = vmatprep.subr.mxu0 0.0
  %206 = vmatpush1.msra.mxu0 %v176
  %207 = vmatprep.subr.mxu0 0.0
  %208 = vmatpush1.msra.mxu0 %v177
  %209 = vmatprep.subr.mxu0 0.0
  %210 = vmatpush1.msra.mxu0 %v178
  %211 = vmatprep.subr.mxu0 0.0
  %212 = vmatpush1.msra.mxu0 %v179
  %213 = vmatprep.subr.mxu0 0.0
  %214 = vmatpush1.msra.mxu0 %v180
  %215 = vmatprep.subr.mxu0 0.0
  %216 = vmatpush1.msra.mxu0 %v181
  %217 = vmatprep.subr.mxu0 0.0
  %218 = vmatpush1.msra.mxu0 %v182
  %219 = vmatprep.subr.mxu0 0.0
  %220 = vmatpush1.msra.mxu0 0.0
  %221 = vmatprep.subr.mxu0 0.0
  %222 = vmatpush1.msra.mxu0 0.0
  %223 = vmatprep.subr.mxu0 0.0
  %224 = vmatpush1.msra.mxu0 0.0
  %225 = vmatprep.subr.mxu0 0.0
  %226 = vmatpush1.msra.mxu0 0.0
  %227 = vmatprep.subr.mxu0 0.0
  %228 = vmatpush1.msra.mxu0 0.0
  %229 = vmatprep.subr.mxu0 0.0
  %230 = vmatpush1.msra.mxu0 0.0
  %231 = vmatprep.subr.mxu0 0.0
  %232 = vmatpush1.msra.mxu0 0.0
  %233 = vmatprep.subr.mxu0 0.0
  %234 = vmatpush1.msra.mxu0 0.0
  %235 = vmatprep.subr.mxu0 0.0
  %236 = vmatpush1.msra.mxu0 0.0
  %237 = vmatprep.subr.mxu0 0.0
  %238 = vmatpush1.msra.mxu0 0.0
  %239 = vmatprep.subr.mxu0 0.0
  %240 = vmatpush1.msra.mxu0 0.0
  %241 = vmatprep.subr.mxu0 0.0
  %242 = vmatpush1.msra.mxu0 0.0
  %243 = vmatprep.subr.mxu0 0.0
  %244 = vmatpush1.msra.mxu0 0.0
  %245 = vmatprep.subr.mxu0 0.0
  %246 = vmatpush1.msra.mxu0 0.0
  %247 = vmatprep.subr.mxu0 0.0
  %248 = vmatpush1.msra.mxu0 0.0
  %249 = vmatprep.subr.mxu0 0.0
  %250 = vmatpush1.msra.mxu0 0.0
  %251 = vmatprep.mubr.f32.mxu0 0.0
  %252 = vmatmul.mubr.f32.gmra.mrb[0].mxu0 %v183
  %v253 = vpop.f32.mrb[0].mxu0
  %v254 = vadd.f32 0.0, %v253
  %v255 = vpop.f32.mrb[0].mxu0
  %256 = vmatprep.mubr.f32.mxu0 0.0
  %257 = vmatmul.mubr.f32.gmra.mrb[0].mxu0 %v184
  %v258 = vpop.f32.mrb[0].mxu0
  %v259 = vadd.f32 0.0, %v258
  %v260 = vpop.f32.mrb[0].mxu0
  %261 = vdwg.mxu0
  %v262 = vadd.f32 %v185, %v254
  %v263 = vadd.f32 %v186, %v259
  %264 = vst [vmem:[#allocation2] sm:$0xff] %v262
  %265 = vst [vmem:[#allocation2 + $0x8] sm:$0xff] %v263
  // Predicated region
  $region22: #{compressed_linear.1} parent=0 // pred_check
    %p266 = pneg %p17
  $region23: #{compressed_linear.1} parent=0 // pred_check_branch
    %268 = sbr.rel (%p266) target = $region25
  $region24: #{compressed_linear.1} parent=0 // pred_region
    %v269 = vld [vmem:[#allocation2] sm:$0xff]
    %v270 = vld [vmem:[#allocation2 + $0x8] sm:$0xff]
    %v271 = vld [vmem:[%s3] sm:$0x1]
    %v273 = vlaneseq
    %v274 = vshrl.u32 %v273, 7
    %v275 = vsub.s32 0, %v274
    %v276 = vrot.slane %v271, %v275
    %v278 = vadd.f32 %v269, %v276
    %v279 = vadd.f32 %v270, %v276
    %280 = vst [vmem:[%s4] sm:$0xff] %v278
    %281 = vst [vmem:[%s4 + $0x8] sm:$0xff] %v279
  $region25: #{compressed_linear.1} parent=0 // pred_fallthru
    _
  // Predicated region
  $region26: #{compressed_linear.1} parent=0 // pred_check
    _
  $region27: #{compressed_linear.1} parent=0 // pred_check_branch
    %283 = sbr.rel (0) target = $region29
  $region28: #{compressed_linear.1} parent=0 // pred_region
    _
  $region29: #{compressed_linear.1} parent=0 // pred_fallthru
    _
  // Predicated region
  $region30: #{compressed_linear.1} parent=0 // pred_check
    _
  $region31: #{compressed_linear.1} parent=0 // pred_check_branch
    %285 = sbr.rel (0) target = $region33
  $region32: #{compressed_linear.1} parent=0 // pred_region
    _
  $region33: #{compressed_linear.1} parent=0 // pred_fallthru
    _

</llo_original>
